<compile_context>
chip_gen: v5e
topology: v5e:2x2
jax: 0.10.0
libtpu: 0.0.40
codegen_flags: <defaults>
</compile_context>

<pallas_src>
import jax
import jax.numpy as jnp
from jax import lax
from jax.experimental import pallas as pl
from jax.experimental.pallas import tpu as pltpu


def _logreg_kernel(x_ref, w_ref, b_ref, o_ref):
    # logits (TB, C) = x (TB, D) . W (C, D)^T  (contract on D), accumulate in f32.
    logits = lax.dot_general(
        x_ref[...], w_ref[...],
        dimension_numbers=(((1,), (1,)), ((), ())),
        preferred_element_type=jnp.float32,
    ) + b_ref[...]                                    # bias (1, C) broadcasts over rows

    # Numerically stable softmax over the class axis (PyTorch dim=1).
    m = jnp.max(logits, axis=-1, keepdims=True)       # (TB, 1)
    e = jnp.exp(logits - m)                           # (TB, C)
    denom = jnp.sum(e, axis=-1, keepdims=True)        # (TB, 1)
    o_ref[...] = (e * pl.reciprocal(denom, approx=False)).astype(o_ref.dtype)


def _round_up(n, m):
    return ((n + m - 1) // m) * m


def _choose_batch_tile(B, block_batch, min_steps=4):
    """Pick a lane-dense (multiple-of-128) batch tile giving >= min_steps grid
    steps when possible, capped at block_batch (VMEM budget)."""
    if B <= 128:
        return B                                  # tiny batch: block == full array dims
    tb = _round_up(pl.cdiv(B, min_steps), 128)
    return int(max(128, min(block_batch, tb)))


def logistic_regression_forward(x, weight, bias, *, block_batch=8192):
    """x: (B, D), weight: (C, D) (PyTorch layout), bias: (C,).

    Returns softmax(x @ weight.T + bias, axis=1) with shape (B, C).
    """
    assert block_batch % 128 == 0, "batch tile cap must be a multiple of 128"
    B, D = x.shape
    C = weight.shape[0]
    b2 = bias.reshape(1, C)                       # (1, C) for row-broadcast in-kernel

    TB = _choose_batch_tile(B, block_batch)
    grid = (pl.cdiv(B, TB),)                      # ragged last block: clipped by Pallas

    return pl.pallas_call(
        _logreg_kernel,
        out_shape=jax.ShapeDtypeStruct((B, C), x.dtype),
        grid_spec=pltpu.PrefetchScalarGridSpec(
            num_scalar_prefetch=0,
            grid=grid,
            in_specs=[
                pl.BlockSpec((TB, D), lambda i: (i, 0)),   # x tile streams over batch
                pl.BlockSpec((C, D), lambda i: (0, 0)),    # weight: VMEM-resident
                pl.BlockSpec((1, C), lambda i: (0, 0)),    # bias:   VMEM-resident
            ],
            out_specs=pl.BlockSpec((TB, C), lambda i: (i, 0)),  # PyTorch (B, C) layout
        ),
        compiler_params=pltpu.CompilerParams(
            dimension_semantics=("parallel",),     # v7x: shard batch loop across 2 TCs
            vmem_limit_bytes=48 * 1024 * 1024,     # headroom for TB~16K, safe on v7x
        ),
    )(x, weight, b2)


def _reference(x, weight, bias):
    return jax.nn.softmax(x @ weight.T + bias, axis=1)


if __name__ == "__main__":
    # TODO(synk): only the forward pass (Linear + Softmax) is implemented; the
    # fit/predict training loop, Adam/scheduler, CrossEntropyLoss and plotting
    # have no kernel role.
    input_dim, num_classes = 32, 8
    key = jax.random.PRNGKey(0)
    kx, kw, kb = jax.random.split(key, 3)

    bound = 1.0 / jnp.sqrt(jnp.float32(input_dim))
    weight = jax.random.uniform(kw, (num_classes, input_dim),
                                minval=-bound, maxval=bound, dtype=jnp.float32)
    bias = jax.random.uniform(kb, (num_classes,),
                              minval=-bound, maxval=bound, dtype=jnp.float32)

    # Exercise: (a) multi-step lane-dense grid, (b) ragged last block, (c) tiny
    # single-block batch. The tile chooser picks TB and the grid automatically.
    for batch in (256, 200, 8):
        x = jax.random.normal(jax.random.fold_in(kx, batch),
                              (batch, input_dim), dtype=jnp.float32)
        out = logistic_regression_forward(x, weight, bias)
        out = jax.block_until_ready(out)

        ref = _reference(x, weight, bias)
        assert out.shape == (batch, num_classes)
        assert jnp.allclose(out, ref, atol=1e-5, rtol=1e-5)
        assert jnp.allclose(jnp.sum(out, axis=1), 1.0, atol=1e-5)

    print("KERNEL_OK")
</pallas_src>

<mosaic_0001>
module attributes {stable_mosaic.version = 11 : i64} {
  func.func @_logreg_kernel(%arg0: i32, %arg1: memref<128x32xf32, #tpu.memory_space<vmem>>, %arg2: memref<8x32xf32, #tpu.memory_space<vmem>>, %arg3: memref<1x8xf32, #tpu.memory_space<vmem>>, %arg4: memref<128x8xf32, #tpu.memory_space<vmem>>) attributes {dimension_semantics = [#tpu.dimension_semantics<parallel>], iteration_bounds = array<i64: 2>, scalar_prefetch = 0 : i64, scratch_operands = 0 : i64, tpu.core_type = #tpu.core_type<tc>, window_params = [{transform_indices = @transform_0, window_bounds = array<i64: 128, 32>}, {pipeline_mode = #tpu.pipeline_mode<synchronous>, transform_indices = @transform_1, window_bounds = array<i64: 8, 32>}, {pipeline_mode = #tpu.pipeline_mode<synchronous>, transform_indices = @transform_2, window_bounds = array<i64: 1, 8>}, {transform_indices = @transform_3, window_bounds = array<i64: 128, 8>}]} {
    %c0 = arith.constant 0 : index
    %c0_0 = arith.constant 0 : index
    %0 = vector.load %arg1[%c0, %c0_0] : memref<128x32xf32, #tpu.memory_space<vmem>>, vector<128x32xf32>
    %c0_1 = arith.constant 0 : index
    %c0_2 = arith.constant 0 : index
    %1 = vector.load %arg2[%c0_1, %c0_2] : memref<8x32xf32, #tpu.memory_space<vmem>>, vector<8x32xf32>
    %cst = arith.constant dense<0.000000e+00> : vector<128x8xf32>
    %2 = tpu.matmul %0, %1, %cst {dimension_numbers = #tpu.dot_dimension_numbers<[1], [1], [0], [0], [0, 0, 1, 0], [], []>} : vector<128x32xf32>, vector<8x32xf32>, vector<128x8xf32> -> vector<128x8xf32>
    %c0_3 = arith.constant 0 : index
    %c0_4 = arith.constant 0 : index
    %3 = vector.load %arg3[%c0_3, %c0_4] : memref<1x8xf32, #tpu.memory_space<vmem>>, vector<1x8xf32>
    %4 = vector.broadcast %3 : vector<1x8xf32> to vector<128x8xf32>
    %5 = arith.addf %2, %4 : vector<128x8xf32>
    %cst_5 = arith.constant dense<0xFF800000> : vector<128xf32>
    %6 = vector.multi_reduction <maximumf>, %5, %cst_5 [1] : vector<128x8xf32> to vector<128xf32>
    %7 = vector.shape_cast %6 : vector<128xf32> to vector<128x1xf32>
    %8 = vector.broadcast %7 : vector<128x1xf32> to vector<128x8xf32>
    %9 = arith.subf %5, %8 : vector<128x8xf32>
    %10 = math.exp %9 : vector<128x8xf32>
    %cst_6 = arith.constant dense<0.000000e+00> : vector<128xf32>
    %11 = vector.multi_reduction <add>, %10, %cst_6 [1] : vector<128x8xf32> to vector<128xf32>
    %12 = vector.shape_cast %11 : vector<128xf32> to vector<128x1xf32>
    %13 = tpu.reciprocal %12 : vector<128x1xf32> -> vector<128x1xf32>
    %14 = vector.broadcast %13 : vector<128x1xf32> to vector<128x8xf32>
    %15 = arith.mulf %10, %14 : vector<128x8xf32>
    %c0_7 = arith.constant 0 : index
    %c0_8 = arith.constant 0 : index
    %16 = vector.load %arg4[%c0_7, %c0_8] : memref<128x8xf32, #tpu.memory_space<vmem>>, vector<128x8xf32>
    tpu.vector_store %arg4[%c0_7, %c0_8], %15 {strides = array<i32>} : memref<128x8xf32, #tpu.memory_space<vmem>>, vector<128x8xf32>,
    return
  }
  func.func @transform_0(%arg0: i32) -> (i32, i32) {
    %c0_i32 = arith.constant 0 : i32
    %c0_i32_0 = arith.constant 0 : i32
    return %arg0, %c0_i32 : i32, i32
  }
  func.func @transform_1(%arg0: i32) -> (i32, i32) {
    %c0_i32 = arith.constant 0 : i32
    %c0_i32_0 = arith.constant 0 : i32
    %c0_i32_1 = arith.constant 0 : i32
    return %c0_i32, %c0_i32_0 : i32, i32
  }
  func.func @transform_2(%arg0: i32) -> (i32, i32) {
    %c0_i32 = arith.constant 0 : i32
    %c0_i32_0 = arith.constant 0 : i32
    %c0_i32_1 = arith.constant 0 : i32
    return %c0_i32, %c0_i32_0 : i32, i32
  }
  func.func @transform_3(%arg0: i32) -> (i32, i32) {
    %c0_i32 = arith.constant 0 : i32
    %c0_i32_0 = arith.constant 0 : i32
    return %arg0, %c0_i32 : i32, i32
  }
}

</mosaic_0001>

<llo_original>
// kernel: tpu_custom_call.1
$region0: #{tpu_custom_call.1}
  #allocation0 [shape = 'u32[]', space=smem, size = 0x4, offset = 0x4, fixed_abs, tag = 'smem constant byte address 0x4 - core index']
  #allocation1 [shape = 'u32[72,128]{1,0:T(1,128)}', space=vmem, size = 0x9000, scoped, tag = 'internal scratch']
  %s0 = inlined_call_operand.vmem [shape: f32[256,32], index: 0, kind: input, shape index: {}]
  %s1 = inlined_call_operand.vmem [shape: f32[8,32], index: 1, kind: input, shape index: {}]
  %s2 = inlined_call_operand.vmem [shape: f32[1,8], index: 2, kind: input, shape index: {}]
  %s3 = inlined_call_operand.vmem [shape: f32[256,8], index: 3, kind: output, shape index: {}]
  %s4 = sld [smem:[#allocation0]]
  $region45: #{tpu_custom_call.1} parent=0
    _
  %s6 = ssub.s32 1, %s4
  %s7 = scalar_select 0, %s6, %s4
  loop: start=0, step=1, limit=4
  $region2: #{tpu_custom_call.1} parent=0 // loop_pre_header
    _
  $region3: #{tpu_custom_call.1} parent=0 // loop_header
    %s9 = sphi 0, %s13
    %p10 = scmp.ge.s32.totalorder %s9, 4
    %s19 = sphi 0, %s21
    %s22 = sphi 0, %s19
    %s23 = sphi 0, %s22
    %s39 = sphi 0, %s23
    %s43 = sphi 0, %s43
    %s45 = sphi 0, %s43
    %s46 = sphi 0, %s45
    %s60 = sphi 0, %s46
    %s64 = sphi 0, %s64
    %s66 = sphi 0, %s64
    %s67 = sphi 0, %s66
    %s81 = sphi 0, %s67
    %s87 = sphi 0, %s89
    %s90 = sphi 0, %s87
    %s91 = sphi 0, %s90
    %s107 = sphi 0, %s91
  $region4: #{tpu_custom_call.1} parent=0 // loop_header_branch
    %12 = sbr.rel (%p10) target = $region8
  $region5: #{tpu_custom_call.1} parent=0 // loop_body
    %s14 = ssub.s32 %s9, 1
    %s15 = ssub.s32 %s9, 2
    %s16 = sadd.s32 %s9, 1
    %s17 = ssub.s32 %s9, %s16
    %p18 = scmp.eq.s32.totalorder %s17, 0
    %s20 = sadd.s32 %s19, 1
    %s21 = scalar_select %p18, %s19, %s20
    %p24 = pneg %p18
    %p25 = scmp.eq.s32.totalorder %s9, 1
    %p26 = por %p24, %p25
    %p27 = scmp.ne.s32.totalorder %s19, %s22
    %p28 = scmp.eq.s32.totalorder %s9, 0
    %p29 = por %p27, %p28
    %p30 = scmp.ne.s32.totalorder %s19, %s22
    %p31 = scmp.eq.s32.totalorder %s14, 1
    %p32 = por %p30, %p31
    %p33 = scmp.ne.s32.totalorder %s22, %s23
    %p34 = scmp.eq.s32.totalorder %s14, 0
    %p35 = por %p33, %p34
    %p36 = scmp.ne.s32.totalorder %s22, %s23
    %p37 = scmp.eq.s32.totalorder %s15, 1
    %p38 = por %p36, %p37
    %p40 = scmp.ne.s32.totalorder %s23, %s39
    %p41 = scmp.eq.s32.totalorder %s15, 0
    %p42 = por %p40, %p41
    %s44 = sadd.s32 %s43, 1
    %p47 = scmp.eq.s32.totalorder %s9, 1
    %p48 = scmp.ne.s32.totalorder %s43, %s45
    %p49 = scmp.eq.s32.totalorder %s9, 0
    %p50 = por %p48, %p49
    %p51 = scmp.ne.s32.totalorder %s43, %s45
    %p52 = scmp.eq.s32.totalorder %s14, 1
    %p53 = por %p51, %p52
    %p54 = scmp.ne.s32.totalorder %s45, %s46
    %p55 = scmp.eq.s32.totalorder %s14, 0
    %p56 = por %p54, %p55
    %p57 = scmp.ne.s32.totalorder %s45, %s46
    %p58 = scmp.eq.s32.totalorder %s15, 1
    %p59 = por %p57, %p58
    %p61 = scmp.ne.s32.totalorder %s46, %s60
    %p62 = scmp.eq.s32.totalorder %s15, 0
    %p63 = por %p61, %p62
    %s65 = sadd.s32 %s64, 1
    %p68 = scmp.eq.s32.totalorder %s9, 1
    %p69 = scmp.ne.s32.totalorder %s64, %s66
    %p70 = scmp.eq.s32.totalorder %s9, 0
    %p71 = por %p69, %p70
    %p72 = scmp.ne.s32.totalorder %s64, %s66
    %p73 = scmp.eq.s32.totalorder %s14, 1
    %p74 = por %p72, %p73
    %p75 = scmp.ne.s32.totalorder %s66, %s67
    %p76 = scmp.eq.s32.totalorder %s14, 0
    %p77 = por %p75, %p76
    %p78 = scmp.ne.s32.totalorder %s66, %s67
    %p79 = scmp.eq.s32.totalorder %s15, 1
    %p80 = por %p78, %p79
    %p82 = scmp.ne.s32.totalorder %s67, %s81
    %p83 = scmp.eq.s32.totalorder %s15, 0
    %p84 = por %p82, %p83
    %s85 = ssub.s32 %s9, %s16
    %p86 = scmp.eq.s32.totalorder %s85, 0
    %s88 = sadd.s32 %s87, 1
    %s89 = scalar_select %p86, %s87, %s88
    %p92 = pneg %p86
    %p93 = scmp.eq.s32.totalorder %s9, 1
    %p94 = por %p92, %p93
    %p95 = scmp.ne.s32.totalorder %s87, %s90
    %p96 = scmp.eq.s32.totalorder %s9, 0
    %p97 = por %p95, %p96
    %p98 = scmp.ne.s32.totalorder %s87, %s90
    %p99 = scmp.eq.s32.totalorder %s14, 1
    %p100 = por %p98, %p99
    %p101 = scmp.ne.s32.totalorder %s90, %s91
    %p102 = scmp.eq.s32.totalorder %s14, 0
    %p103 = por %p101, %p102
    %p104 = scmp.ne.s32.totalorder %s90, %s91
    %p105 = scmp.eq.s32.totalorder %s15, 1
    %p106 = por %p104, %p105
    %p108 = scmp.ne.s32.totalorder %s91, %s107
    %p109 = scmp.eq.s32.totalorder %s15, 0
    %p110 = por %p108, %p109
    %p111 = scmp.le.s32.totalorder 1, %s9
    %p112 = scmp.lt.s32.totalorder %s9, 3
    %p113 = pnand %p111, %p112
    %p114 = pneg %p113
    // Predicated region
    $region9: #{tpu_custom_call.1} parent=5 // pred_check
      _
    $region10: #{tpu_custom_call.1} parent=5 // pred_check_branch
      %116 = sbr.rel (%p113) target = $region12
    $region11: #{tpu_custom_call.1} parent=5 // pred_region
      %s117 = ssub.s32 %s9, 1
      // Predicated region
      $region13: #{tpu_custom_call.1} parent=11 // pred_check
        %p118 = pneg %p56
      $region14: #{tpu_custom_call.1} parent=11 // pred_check_branch
        %120 = sbr.rel (%p118) target = $region16
      $region15: #{tpu_custom_call.1} parent=11 // pred_region
        _
      $region16: #{tpu_custom_call.1} parent=11 // pred_fallthru
        _
      // Predicated region
      $region17: #{tpu_custom_call.1} parent=11 // pred_check
        %p121 = pneg %p77
      $region18: #{tpu_custom_call.1} parent=11 // pred_check_branch
        %123 = sbr.rel (%p121) target = $region20
      $region19: #{tpu_custom_call.1} parent=11 // pred_region
        _
      $region20: #{tpu_custom_call.1} parent=11 // pred_fallthru
        _
    $region12: #{tpu_custom_call.1} parent=5 // pred_fallthru
      _
    %p124 = scmp.lt.s32.totalorder %s9, 2
    // Predicated region
    $region21: #{tpu_custom_call.1} parent=5 // pred_check
      %p125 = pneg %p124
    $region22: #{tpu_custom_call.1} parent=5 // pred_check_branch
      %127 = sbr.rel (%p125) target = $region24
    $region23: #{tpu_custom_call.1} parent=5 // pred_region
      // Predicated region
      $region25: #{tpu_custom_call.1} parent=23 // pred_check
        %p128 = pneg %p29
      $region26: #{tpu_custom_call.1} parent=23 // pred_check_branch
        %130 = sbr.rel (%p128) target = $region28
      $region27: #{tpu_custom_call.1} parent=23 // pred_region
        %s131 = smul.u32 16, %s9
        %p132 = scmp.lt.s32.totalorder %s131, 31
        %s133 = scalar_select %p132, %s131, 31
        %s134 = smul.addr %s133, 8
        %s135 = scalar_lea.vmem %s0, %s134
        %s136 = smul.u32 16, %s9
      $region28: #{tpu_custom_call.1} parent=23 // pred_fallthru
        _
    $region24: #{tpu_custom_call.1} parent=5 // pred_fallthru
      _
    %p137 = scmp.le.s32.totalorder 1, %s9
    %p138 = scmp.lt.s32.totalorder %s9, 3
    %p139 = pnand %p137, %p138
    %p140 = pneg %p139
    // Predicated region
    $region29: #{tpu_custom_call.1} parent=5 // pred_check
      _
    $region30: #{tpu_custom_call.1} parent=5 // pred_check_branch
      %142 = sbr.rel (%p139) target = $region32
    $region31: #{tpu_custom_call.1} parent=5 // pred_region
      %s143 = ssub.s32 %s9, 1
      %s144 = smul.u32 16, %s14
      %p145 = scmp.lt.s32.totalorder %s144, 31
      %s146 = scalar_select %p145, %s144, 31
      %s147 = smul.addr %s146, 8
      %s148 = scalar_lea.vmem %s0, %s147
      %p149 = pneg %p35
      %p150 = pneg %p32
      %p151 = pneg %p56
      %p152 = pneg %p53
      %p153 = pneg %p77
      %p154 = pneg %p74
      %p155 = pneg %p103
      %p156 = pneg %p100
      %s157 = smul.u32 16, %s14
      %p158 = scmp.lt.s32.totalorder %s157, 31
      %s159 = scalar_select %p158, %s157, 31
      %s160 = smul.addr %s159, 8
      %s161 = scalar_lea.vmem %s3, %s160
      %s162 = smul.u32 16, %s14
      %p163 = scmp.lt.s32.totalorder %s162, 31
      %s164 = scalar_select %p163, %s162, 31
      %s165 = smul.addr %s164, 8
      %s166 = scalar_lea.vmem %s0, %s165
      %s167 = smul.u32 16, %s14
      %s168 = smul.u32 16, %s14
      %p169 = scmp.lt.s32.totalorder %s168, 31
      %s170 = scalar_select %p169, %s168, 31
      %s171 = smul.addr %s170, 8
      %s172 = scalar_lea.vmem %s3, %s171
      %s173 = smul.u32 16, %s14
      %v174 = vld [vmem:[%s166] sm:$0xff]
      %v175 = vld [vmem:[%s166 + $0x8] sm:$0xff]
      %v176 = vld [vmem:[%s166 + $0x10] sm:$0xff]
      %v177 = vld [vmem:[%s166 + $0x18] sm:$0xff]
      %v178 = vld [vmem:[%s166 + $0x20] sm:$0xff]
      %v179 = vld [vmem:[%s166 + $0x28] sm:$0xff]
      %v180 = vld [vmem:[%s166 + $0x30] sm:$0xff]
      %v181 = vld [vmem:[%s166 + $0x38] sm:$0xff]
      %v182 = vld [vmem:[%s166 + $0x40] sm:$0xff]
      %v183 = vld [vmem:[%s166 + $0x48] sm:$0xff]
      %v184 = vld [vmem:[%s166 + $0x50] sm:$0xff]
      %v185 = vld [vmem:[%s166 + $0x58] sm:$0xff]
      %v186 = vld [vmem:[%s166 + $0x60] sm:$0xff]
      %v187 = vld [vmem:[%s166 + $0x68] sm:$0xff]
      %v188 = vld [vmem:[%s166 + $0x70] sm:$0xff]
      %v189 = vld [vmem:[%s166 + $0x78] sm:$0xff]
      %v190 = vld [vmem:[%s1] sm:$0xff]
      %v191 = vld [vmem:[%s2] sm:$0x1]
      %v193 = vperm.slane %v191, 0
      %vm195 = vcmask 261120
      %v197 = vsel %vm195, %v174, 0
      %v200 = vsel %vm195, %v175, 0
      %v203 = vsel %vm195, %v176, 0
      %v206 = vsel %vm195, %v177, 0
      %v209 = vsel %vm195, %v178, 0
      %v212 = vsel %vm195, %v179, 0
      %v215 = vsel %vm195, %v180, 0
      %v218 = vsel %vm195, %v181, 0
      %v221 = vsel %vm195, %v182, 0
      %v224 = vsel %vm195, %v183, 0
      %v227 = vsel %vm195, %v184, 0
      %v230 = vsel %vm195, %v185, 0
      %v233 = vsel %vm195, %v186, 0
      %v236 = vsel %vm195, %v187, 0
      %v239 = vsel %vm195, %v188, 0
      %v242 = vsel %vm195, %v189, 0
      %v245 = vsel %vm195, %v190, 0
      %247 = vmatpush.xpose.msra.mxu0 0.0
      %248 = vmatpush.xpose.msra.mxu0 0.0
      %249 = vmatpush.xpose.msra.mxu0 0.0
      %250 = vmatpush.xpose.msra.mxu0 0.0
      %251 = vmatpush.xpose.msra.mxu0 0.0
      %252 = vmatpush.xpose.msra.mxu0 0.0
      %253 = vmatpush.xpose.msra.mxu0 0.0
      %254 = vmatpush.xpose.msra.mxu0 0.0
      %255 = vmatpush.xpose.msra.mxu0 0.0
      %256 = vmatpush.xpose.msra.mxu0 0.0
      %257 = vmatpush.xpose.msra.mxu0 0.0
      %258 = vmatpush.xpose.msra.mxu0 0.0
      %259 = vmatpush.xpose.msra.mxu0 0.0
      %260 = vmatpush.xpose.msra.mxu0 0.0
      %261 = vmatpush.xpose.msra.mxu0 0.0
      %262 = vmatpush.xpose.msra.mxu0 %v245
      %263 = vmatmul.f32.gmra.mxu0 %v197
      %v264 = vpop.f32.mrf.mxu0
      %v265 = vadd.f32 %v193, %v264
      %266 = vmatmul.f32.gmra.mxu0 %v200
      %v267 = vpop.f32.mrf.mxu0
      %v268 = vadd.f32 %v193, %v267
      %269 = vmatmul.f32.gmra.mxu0 %v203
      %v270 = vpop.f32.mrf.mxu0
      %v271 = vadd.f32 %v193, %v270
      %272 = vmatmul.f32.gmra.mxu0 %v206
      %v273 = vpop.f32.mrf.mxu0
      %v274 = vadd.f32 %v193, %v273
      %275 = vmatmul.f32.gmra.mxu0 %v209
      %v276 = vpop.f32.mrf.mxu0
      %v277 = vadd.f32 %v193, %v276
      %278 = vmatmul.f32.gmra.mxu0 %v212
      %v279 = vpop.f32.mrf.mxu0
      %v280 = vadd.f32 %v193, %v279
      %281 = vmatmul.f32.gmra.mxu0 %v215
      %v282 = vpop.f32.mrf.mxu0
      %v283 = vadd.f32 %v193, %v282
      %284 = vmatmul.f32.gmra.mxu0 %v218
      %v285 = vpop.f32.mrf.mxu0
      %v286 = vadd.f32 %v193, %v285
      %287 = vmatmul.f32.gmra.mxu0 %v221
      %v288 = vpop.f32.mrf.mxu0
      %v289 = vadd.f32 %v193, %v288
      %290 = vmatmul.f32.gmra.mxu0 %v224
      %v291 = vpop.f32.mrf.mxu0
      %v292 = vadd.f32 %v193, %v291
      %293 = vmatmul.f32.gmra.mxu0 %v227
      %v294 = vpop.f32.mrf.mxu0
      %v295 = vadd.f32 %v193, %v294
      %296 = vmatmul.f32.gmra.mxu0 %v230
      %v297 = vpop.f32.mrf.mxu0
      %v298 = vadd.f32 %v193, %v297
      %299 = vmatmul.f32.gmra.mxu0 %v233
      %v300 = vpop.f32.mrf.mxu0
      %v301 = vadd.f32 %v193, %v300
      %302 = vmatmul.f32.gmra.mxu0 %v236
      %v303 = vpop.f32.mrf.mxu0
      %v304 = vadd.f32 %v193, %v303
      %305 = vmatmul.f32.gmra.mxu0 %v239
      %v306 = vpop.f32.mrf.mxu0
      %v307 = vadd.f32 %v193, %v306
      %308 = vmatmul.f32.gmra.mxu0 %v242
      %v309 = vpop.f32.mrf.mxu0
      %v310 = vadd.f32 %v193, %v309
      %311 = vdwg.mxu0
      %vm312 = vcmask 64512
      %v313 = vsel %vm312, %v265, -inf
      %314 = vmax.xlane.f32.xlu0 %v313
      %v315 = vpop.xlane.xlu0 %314
      %v316 = vsel %vm312, %v268, -inf
      %317 = vmax.xlane.f32.xlu0 %v316
      %v318 = vpop.xlane.xlu0 %317
      %v319 = vsel %vm312, %v271, -inf
      %320 = vmax.xlane.f32.xlu0 %v319
      %v321 = vpop.xlane.xlu0 %320
      %v322 = vsel %vm312, %v274, -inf
      %323 = vmax.xlane.f32.xlu0 %v322
      %v324 = vpop.xlane.xlu0 %323
      %v325 = vsel %vm312, %v277, -inf
      %326 = vmax.xlane.f32.xlu0 %v325
      %v327 = vpop.xlane.xlu0 %326
      %v328 = vsel %vm312, %v280, -inf
      %329 = vmax.xlane.f32.xlu0 %v328
      %v330 = vpop.xlane.xlu0 %329
      %v331 = vsel %vm312, %v283, -inf
      %332 = vmax.xlane.f32.xlu0 %v331
      %v333 = vpop.xlane.xlu0 %332
      %v334 = vsel %vm312, %v286, -inf
      %335 = vmax.xlane.f32.xlu0 %v334
      %v336 = vpop.xlane.xlu0 %335
      %v337 = vsel %vm312, %v289, -inf
      %338 = vmax.xlane.f32.xlu0 %v337
      %v339 = vpop.xlane.xlu0 %338
      %v340 = vsel %vm312, %v292, -inf
      %341 = vmax.xlane.f32.xlu0 %v340
      %v342 = vpop.xlane.xlu0 %341
      %v343 = vsel %vm312, %v295, -inf
      %344 = vmax.xlane.f32.xlu0 %v343
      %v345 = vpop.xlane.xlu0 %344
      %v346 = vsel %vm312, %v298, -inf
      %347 = vmax.xlane.f32.xlu0 %v346
      %v348 = vpop.xlane.xlu0 %347
      %v349 = vsel %vm312, %v301, -inf
      %350 = vmax.xlane.f32.xlu0 %v349
      %v351 = vpop.xlane.xlu0 %350
      %v352 = vsel %vm312, %v304, -inf
      %353 = vmax.xlane.f32.xlu0 %v352
      %v354 = vpop.xlane.xlu0 %353
      %v355 = vsel %vm312, %v307, -inf
      %356 = vmax.xlane.f32.xlu0 %v355
      %v357 = vpop.xlane.xlu0 %356
      %v358 = vsel %vm312, %v310, -inf
      %359 = vmax.xlane.f32.xlu0 %v358
      %v360 = vpop.xlane.xlu0 %359
      %v361 = vsub.f32 %v265, %v315
      %v362 = vsub.f32 %v268, %v318
      %v363 = vsub.f32 %v271, %v321
      %v364 = vsub.f32 %v274, %v324
      %v365 = vsub.f32 %v277, %v327
      %v366 = vsub.f32 %v280, %v330
      %v367 = vsub.f32 %v283, %v333
      %v368 = vsub.f32 %v286, %v336
      %v369 = vsub.f32 %v289, %v339
      %v370 = vsub.f32 %v292, %v342
      %v371 = vsub.f32 %v295, %v345
      %v372 = vsub.f32 %v298, %v348
      %v373 = vsub.f32 %v301, %v351
      %v374 = vsub.f32 %v304, %v354
      %v375 = vsub.f32 %v307, %v357
      %v376 = vsub.f32 %v310, %v360
      %v377 = vmul.f32 %v361, 1.442695
      %v378 = vpow.pop %v377
      %v379 = vmul.f32 %v362, 1.442695
      %v380 = vpow.pop %v379
      %v381 = vmul.f32 %v363, 1.442695
      %v382 = vpow.pop %v381
      %v383 = vmul.f32 %v364, 1.442695
      %v384 = vpow.pop %v383
      %v385 = vmul.f32 %v365, 1.442695
      %v386 = vpow.pop %v385
      %v387 = vmul.f32 %v366, 1.442695
      %v388 = vpow.pop %v387
      %v389 = vmul.f32 %v367, 1.442695
      %v390 = vpow.pop %v389
      %v391 = vmul.f32 %v368, 1.442695
      %v392 = vpow.pop %v391
      %v393 = vmul.f32 %v369, 1.442695
      %v394 = vpow.pop %v393
      %v395 = vmul.f32 %v370, 1.442695
      %v396 = vpow.pop %v395
      %v397 = vmul.f32 %v371, 1.442695
      %v398 = vpow.pop %v397
      %v399 = vmul.f32 %v372, 1.442695
      %v400 = vpow.pop %v399
      %v401 = vmul.f32 %v373, 1.442695
      %v402 = vpow.pop %v401
      %v403 = vmul.f32 %v374, 1.442695
      %v404 = vpow.pop %v403
      %v405 = vmul.f32 %v375, 1.442695
      %v406 = vpow.pop %v405
      %v407 = vmul.f32 %v376, 1.442695
      %v408 = vpow.pop %v407
      %v409 = vsel %vm312, %v378, 0.0
      %410 = vadd.xlane.f32.xlu0 %v409
      %v411 = vpop.xlane.xlu0 %410
      %v412 = vsel %vm312, %v380, 0.0
      %413 = vadd.xlane.f32.xlu0 %v412
      %v414 = vpop.xlane.xlu0 %413
      %v415 = vsel %vm312, %v382, 0.0
      %416 = vadd.xlane.f32.xlu0 %v415
      %v417 = vpop.xlane.xlu0 %416
      %v418 = vsel %vm312, %v384, 0.0
      %419 = vadd.xlane.f32.xlu0 %v418
      %v420 = vpop.xlane.xlu0 %419
      %v421 = vsel %vm312, %v386, 0.0
      %422 = vadd.xlane.f32.xlu0 %v421
      %v423 = vpop.xlane.xlu0 %422
      %v424 = vsel %vm312, %v388, 0.0
      %425 = vadd.xlane.f32.xlu0 %v424
      %v426 = vpop.xlane.xlu0 %425
      %v427 = vsel %vm312, %v390, 0.0
      %428 = vadd.xlane.f32.xlu0 %v427
      %v429 = vpop.xlane.xlu0 %428
      %v430 = vsel %vm312, %v392, 0.0
      %431 = vadd.xlane.f32.xlu0 %v430
      %v432 = vpop.xlane.xlu0 %431
      %v433 = vsel %vm312, %v394, 0.0
      %434 = vadd.xlane.f32.xlu0 %v433
      %v435 = vpop.xlane.xlu0 %434
      %v436 = vsel %vm312, %v396, 0.0
      %437 = vadd.xlane.f32.xlu0 %v436
      %v438 = vpop.xlane.xlu0 %437
      %v439 = vsel %vm312, %v398, 0.0
      %440 = vadd.xlane.f32.xlu0 %v439
      %v441 = vpop.xlane.xlu0 %440
      %v442 = vsel %vm312, %v400, 0.0
      %443 = vadd.xlane.f32.xlu0 %v442
      %v444 = vpop.xlane.xlu0 %443
      %v445 = vsel %vm312, %v402, 0.0
      %446 = vadd.xlane.f32.xlu0 %v445
      %v447 = vpop.xlane.xlu0 %446
      %v448 = vsel %vm312, %v404, 0.0
      %449 = vadd.xlane.f32.xlu0 %v448
      %v450 = vpop.xlane.xlu0 %449
      %v451 = vsel %vm312, %v406, 0.0
      %452 = vadd.xlane.f32.xlu0 %v451
      %v453 = vpop.xlane.xlu0 %452
      %v454 = vsel %vm312, %v408, 0.0
      %455 = vadd.xlane.f32.xlu0 %v454
      %v456 = vpop.xlane.xlu0 %455
      %v457 = vrcp.pop %v411
      %v458 = vmul.f32 %v411, %v457
      %v459 = vsub.f32 1.0, %v458
      %v460 = vmul.f32 %v457, %v459
      %v461 = vadd.f32 %v457, %v460
      %vm462 = vweird.f32 %v411
      %vm463 = vweird.f32 %v457
      %vm464 = vmor %vm462, %vm463
      %v465 = vsel %vm464, %v457, %v461
      %v466 = vand.u32 2147483647, %v411
      %vm467 = vcmp.eq.f32.partialorder %v466, 8.507059e+37
      %v468 = vand.u32 %v411, 2147483648
      %v469 = vor.u32 1.1754944e-38, %v468
      %v470 = vsel %vm467, %v469, %v465
      %v471 = vrcp.pop %v414
      %v472 = vmul.f32 %v414, %v471
      %v473 = vsub.f32 1.0, %v472
      %v474 = vmul.f32 %v471, %v473
      %v475 = vadd.f32 %v471, %v474
      %vm476 = vweird.f32 %v414
      %vm477 = vweird.f32 %v471
      %vm478 = vmor %vm476, %vm477
      %v479 = vsel %vm478, %v471, %v475
      %v480 = vand.u32 2147483647, %v414
      %vm481 = vcmp.eq.f32.partialorder %v480, 8.507059e+37
      %v482 = vand.u32 %v414, 2147483648
      %v483 = vor.u32 1.1754944e-38, %v482
      %v484 = vsel %vm481, %v483, %v479
      %v485 = vrcp.pop %v417
      %v486 = vmul.f32 %v417, %v485
      %v487 = vsub.f32 1.0, %v486
      %v488 = vmul.f32 %v485, %v487
      %v489 = vadd.f32 %v485, %v488
      %vm490 = vweird.f32 %v417
      %vm491 = vweird.f32 %v485
      %vm492 = vmor %vm490, %vm491
      %v493 = vsel %vm492, %v485, %v489
      %v494 = vand.u32 2147483647, %v417
      %vm495 = vcmp.eq.f32.partialorder %v494, 8.507059e+37
      %v496 = vand.u32 %v417, 2147483648
      %v497 = vor.u32 1.1754944e-38, %v496
      %v498 = vsel %vm495, %v497, %v493
      %v499 = vrcp.pop %v420
      %v500 = vmul.f32 %v420, %v499
      %v501 = vsub.f32 1.0, %v500
      %v502 = vmul.f32 %v499, %v501
      %v503 = vadd.f32 %v499, %v502
      %vm504 = vweird.f32 %v420
      %vm505 = vweird.f32 %v499
      %vm506 = vmor %vm504, %vm505
      %v507 = vsel %vm506, %v499, %v503
      %v508 = vand.u32 2147483647, %v420
      %vm509 = vcmp.eq.f32.partialorder %v508, 8.507059e+37
      %v510 = vand.u32 %v420, 2147483648
      %v511 = vor.u32 1.1754944e-38, %v510
      %v512 = vsel %vm509, %v511, %v507
      %v513 = vrcp.pop %v423
      %v514 = vmul.f32 %v423, %v513
      %v515 = vsub.f32 1.0, %v514
      %v516 = vmul.f32 %v513, %v515
      %v517 = vadd.f32 %v513, %v516
      %vm518 = vweird.f32 %v423
      %vm519 = vweird.f32 %v513
      %vm520 = vmor %vm518, %vm519
      %v521 = vsel %vm520, %v513, %v517
      %v522 = vand.u32 2147483647, %v423
      %vm523 = vcmp.eq.f32.partialorder %v522, 8.507059e+37
      %v524 = vand.u32 %v423, 2147483648
      %v525 = vor.u32 1.1754944e-38, %v524
      %v526 = vsel %vm523, %v525, %v521
      %v527 = vrcp.pop %v426
      %v528 = vmul.f32 %v426, %v527
      %v529 = vsub.f32 1.0, %v528
      %v530 = vmul.f32 %v527, %v529
      %v531 = vadd.f32 %v527, %v530
      %vm532 = vweird.f32 %v426
      %vm533 = vweird.f32 %v527
      %vm534 = vmor %vm532, %vm533
      %v535 = vsel %vm534, %v527, %v531
      %v536 = vand.u32 2147483647, %v426
      %vm537 = vcmp.eq.f32.partialorder %v536, 8.507059e+37
      %v538 = vand.u32 %v426, 2147483648
      %v539 = vor.u32 1.1754944e-38, %v538
      %v540 = vsel %vm537, %v539, %v535
      %v541 = vrcp.pop %v429
      %v542 = vmul.f32 %v429, %v541
      %v543 = vsub.f32 1.0, %v542
      %v544 = vmul.f32 %v541, %v543
      %v545 = vadd.f32 %v541, %v544
      %vm546 = vweird.f32 %v429
      %vm547 = vweird.f32 %v541
      %vm548 = vmor %vm546, %vm547
      %v549 = vsel %vm548, %v541, %v545
      %v550 = vand.u32 2147483647, %v429
      %vm551 = vcmp.eq.f32.partialorder %v550, 8.507059e+37
      %v552 = vand.u32 %v429, 2147483648
      %v553 = vor.u32 1.1754944e-38, %v552
      %v554 = vsel %vm551, %v553, %v549
      %v555 = vrcp.pop %v432
      %v556 = vmul.f32 %v432, %v555
      %v557 = vsub.f32 1.0, %v556
      %v558 = vmul.f32 %v555, %v557
      %v559 = vadd.f32 %v555, %v558
      %vm560 = vweird.f32 %v432
      %vm561 = vweird.f32 %v555
      %vm562 = vmor %vm560, %vm561
      %v563 = vsel %vm562, %v555, %v559
      %v564 = vand.u32 2147483647, %v432
      %vm565 = vcmp.eq.f32.partialorder %v564, 8.507059e+37
      %v566 = vand.u32 %v432, 2147483648
      %v567 = vor.u32 1.1754944e-38, %v566
      %v568 = vsel %vm565, %v567, %v563
      %v569 = vrcp.pop %v435
      %v570 = vmul.f32 %v435, %v569
      %v571 = vsub.f32 1.0, %v570
      %v572 = vmul.f32 %v569, %v571
      %v573 = vadd.f32 %v569, %v572
      %vm574 = vweird.f32 %v435
      %vm575 = vweird.f32 %v569
      %vm576 = vmor %vm574, %vm575
      %v577 = vsel %vm576, %v569, %v573
      %v578 = vand.u32 2147483647, %v435
      %vm579 = vcmp.eq.f32.partialorder %v578, 8.507059e+37
      %v580 = vand.u32 %v435, 2147483648
      %v581 = vor.u32 1.1754944e-38, %v580
      %v582 = vsel %vm579, %v581, %v577
      %v583 = vrcp.pop %v438
      %v584 = vmul.f32 %v438, %v583
      %v585 = vsub.f32 1.0, %v584
      %v586 = vmul.f32 %v583, %v585
      %v587 = vadd.f32 %v583, %v586
      %vm588 = vweird.f32 %v438
      %vm589 = vweird.f32 %v583
      %vm590 = vmor %vm588, %vm589
      %v591 = vsel %vm590, %v583, %v587
      %v592 = vand.u32 2147483647, %v438
      %vm593 = vcmp.eq.f32.partialorder %v592, 8.507059e+37
      %v594 = vand.u32 %v438, 2147483648
      %v595 = vor.u32 1.1754944e-38, %v594
      %v596 = vsel %vm593, %v595, %v591
      %v597 = vrcp.pop %v441
      %v598 = vmul.f32 %v441, %v597
      %v599 = vsub.f32 1.0, %v598
      %v600 = vmul.f32 %v597, %v599
      %v601 = vadd.f32 %v597, %v600
      %vm602 = vweird.f32 %v441
      %vm603 = vweird.f32 %v597
      %vm604 = vmor %vm602, %vm603
      %v605 = vsel %vm604, %v597, %v601
      %v606 = vand.u32 2147483647, %v441
      %vm607 = vcmp.eq.f32.partialorder %v606, 8.507059e+37
      %v608 = vand.u32 %v441, 2147483648
      %v609 = vor.u32 1.1754944e-38, %v608
      %v610 = vsel %vm607, %v609, %v605
      %v611 = vrcp.pop %v444
      %v612 = vmul.f32 %v444, %v611
      %v613 = vsub.f32 1.0, %v612
      %v614 = vmul.f32 %v611, %v613
      %v615 = vadd.f32 %v611, %v614
      %vm616 = vweird.f32 %v444
      %vm617 = vweird.f32 %v611
      %vm618 = vmor %vm616, %vm617
      %v619 = vsel %vm618, %v611, %v615
      %v620 = vand.u32 2147483647, %v444
      %vm621 = vcmp.eq.f32.partialorder %v620, 8.507059e+37
      %v622 = vand.u32 %v444, 2147483648
      %v623 = vor.u32 1.1754944e-38, %v622
      %v624 = vsel %vm621, %v623, %v619
      %v625 = vrcp.pop %v447
      %v626 = vmul.f32 %v447, %v625
      %v627 = vsub.f32 1.0, %v626
      %v628 = vmul.f32 %v625, %v627
      %v629 = vadd.f32 %v625, %v628
      %vm630 = vweird.f32 %v447
      %vm631 = vweird.f32 %v625
      %vm632 = vmor %vm630, %vm631
      %v633 = vsel %vm632, %v625, %v629
      %v634 = vand.u32 2147483647, %v447
      %vm635 = vcmp.eq.f32.partialorder %v634, 8.507059e+37
      %v636 = vand.u32 %v447, 2147483648
      %v637 = vor.u32 1.1754944e-38, %v636
      %v638 = vsel %vm635, %v637, %v633
      %v639 = vrcp.pop %v450
      %v640 = vmul.f32 %v450, %v639
      %v641 = vsub.f32 1.0, %v640
      %v642 = vmul.f32 %v639, %v641
      %v643 = vadd.f32 %v639, %v642
      %vm644 = vweird.f32 %v450
      %vm645 = vweird.f32 %v639
      %vm646 = vmor %vm644, %vm645
      %v647 = vsel %vm646, %v639, %v643
      %v648 = vand.u32 2147483647, %v450
      %vm649 = vcmp.eq.f32.partialorder %v648, 8.507059e+37
      %v650 = vand.u32 %v450, 2147483648
      %v651 = vor.u32 1.1754944e-38, %v650
      %v652 = vsel %vm649, %v651, %v647
      %v653 = vrcp.pop %v453
      %v654 = vmul.f32 %v453, %v653
      %v655 = vsub.f32 1.0, %v654
      %v656 = vmul.f32 %v653, %v655
      %v657 = vadd.f32 %v653, %v656
      %vm658 = vweird.f32 %v453
      %vm659 = vweird.f32 %v653
      %vm660 = vmor %vm658, %vm659
      %v661 = vsel %vm660, %v653, %v657
      %v662 = vand.u32 2147483647, %v453
      %vm663 = vcmp.eq.f32.partialorder %v662, 8.507059e+37
      %v664 = vand.u32 %v453, 2147483648
      %v665 = vor.u32 1.1754944e-38, %v664
      %v666 = vsel %vm663, %v665, %v661
      %v667 = vrcp.pop %v456
      %v668 = vmul.f32 %v456, %v667
      %v669 = vsub.f32 1.0, %v668
      %v670 = vmul.f32 %v667, %v669
      %v671 = vadd.f32 %v667, %v670
      %vm672 = vweird.f32 %v456
      %vm673 = vweird.f32 %v667
      %vm674 = vmor %vm672, %vm673
      %v675 = vsel %vm674, %v667, %v671
      %v676 = vand.u32 2147483647, %v456
      %vm677 = vcmp.eq.f32.partialorder %v676, 8.507059e+37
      %v678 = vand.u32 %v456, 2147483648
      %v679 = vor.u32 1.1754944e-38, %v678
      %v680 = vsel %vm677, %v679, %v675
      %v681 = vmul.f32 %v378, %v470
      %v682 = vmul.f32 %v380, %v484
      %v683 = vmul.f32 %v382, %v498
      %v684 = vmul.f32 %v384, %v512
      %v685 = vmul.f32 %v386, %v526
      %v686 = vmul.f32 %v388, %v540
      %v687 = vmul.f32 %v390, %v554
      %v688 = vmul.f32 %v392, %v568
      %v689 = vmul.f32 %v394, %v582
      %v690 = vmul.f32 %v396, %v596
      %v691 = vmul.f32 %v398, %v610
      %v692 = vmul.f32 %v400, %v624
      %v693 = vmul.f32 %v402, %v638
      %v694 = vmul.f32 %v404, %v652
      %v695 = vmul.f32 %v406, %v666
      %v696 = vmul.f32 %v408, %v680
      %697 = vst.msk [vmem:[%s172] sm:$0xff] %vm312, %v681
      %698 = vst.msk [vmem:[%s172 + $0x8] sm:$0xff] %vm312, %v682
      %699 = vst.msk [vmem:[%s172 + $0x10] sm:$0xff] %vm312, %v683
      %700 = vst.msk [vmem:[%s172 + $0x18] sm:$0xff] %vm312, %v684
      %701 = vst.msk [vmem:[%s172 + $0x20] sm:$0xff] %vm312, %v685
      %702 = vst.msk [vmem:[%s172 + $0x28] sm:$0xff] %vm312, %v686
      %703 = vst.msk [vmem:[%s172 + $0x30] sm:$0xff] %vm312, %v687
      %704 = vst.msk [vmem:[%s172 + $0x38] sm:$0xff] %vm312, %v688
      %705 = vst.msk [vmem:[%s172 + $0x40] sm:$0xff] %vm312, %v689
      %706 = vst.msk [vmem:[%s172 + $0x48] sm:$0xff] %vm312, %v690
      %707 = vst.msk [vmem:[%s172 + $0x50] sm:$0xff] %vm312, %v691
      %708 = vst.msk [vmem:[%s172 + $0x58] sm:$0xff] %vm312, %v692
      %709 = vst.msk [vmem:[%s172 + $0x60] sm:$0xff] %vm312, %v693
      %710 = vst.msk [vmem:[%s172 + $0x68] sm:$0xff] %vm312, %v694
      %711 = vst.msk [vmem:[%s172 + $0x70] sm:$0xff] %vm312, %v695
      %712 = vst.msk [vmem:[%s172 + $0x78] sm:$0xff] %vm312, %v696
      %s713 = smul.u32 16, %s14
      %p714 = scmp.lt.s32.totalorder %s713, 31
      %s715 = scalar_select %p714, %s713, 31
      %s716 = smul.addr %s715, 8
      %s717 = scalar_lea.vmem %s3, %s716
      // Predicated region
      $region33: #{tpu_custom_call.1} parent=31 // pred_check
        %p718 = pneg %p100
      $region34: #{tpu_custom_call.1} parent=31 // pred_check_branch
        %720 = sbr.rel (%p718) target = $region36
      $region35: #{tpu_custom_call.1} parent=31 // pred_region
        %s721 = smul.u32 16, %s14
      $region36: #{tpu_custom_call.1} parent=31 // pred_fallthru
        _
    $region32: #{tpu_custom_call.1} parent=5 // pred_fallthru
      _
    %p722 = scmp.le.s32.totalorder 2, %s9
    // Predicated region
    $region37: #{tpu_custom_call.1} parent=5 // pred_check
      %p723 = pneg %p722
    $region38: #{tpu_custom_call.1} parent=5 // pred_check_branch
      %725 = sbr.rel (%p723) target = $region40
    $region39: #{tpu_custom_call.1} parent=5 // pred_region
      %s726 = ssub.s32 %s9, 2
      // Predicated region
      $region41: #{tpu_custom_call.1} parent=39 // pred_check
        %p727 = pneg %p106
      $region42: #{tpu_custom_call.1} parent=39 // pred_check_branch
        %729 = sbr.rel (%p727) target = $region44
      $region43: #{tpu_custom_call.1} parent=39 // pred_region
        %s730 = smul.u32 16, %s15
        %p731 = scmp.lt.s32.totalorder %s730, 31
        %s732 = scalar_select %p731, %s730, 31
        %s733 = smul.addr %s732, 8
        %s734 = scalar_lea.vmem %s3, %s733
      $region44: #{tpu_custom_call.1} parent=39 // pred_fallthru
        _
    $region40: #{tpu_custom_call.1} parent=5 // pred_fallthru
      _
  $region6: #{tpu_custom_call.1} parent=0 // loop_footer
    %s13 = sadd.s32 1, %s9
  $region7: #{tpu_custom_call.1} parent=0 // loop_footer_branch
    %8 = sbr.rel target = $region3
  $region8: #{tpu_custom_call.1} parent=0 // loop_exit
    _

</llo_original>
